<compile_context>
chip_gen: v7x
topology: tpu7x:2x2x1
jax: 0.10.0
libtpu: 0.0.40
codegen_flags: <defaults>
</compile_context>

<pallas_src>
import jax
import jax.numpy as jnp
from jax.experimental import pallas as pl
from jax.experimental.pallas import tpu as pltpu


def _decoder_base_copy_kernel(enc_hbm_ref, out_hbm_ref, copy_sem):
    # Abstract base forward: no compute — pass the encoding through with a
    # single HBM->HBM DMA.  The DMA engine does the copy; the TensorCore and
    # VMEM stay completely free.
    cp = pltpu.make_async_copy(enc_hbm_ref, out_hbm_ref, copy_sem)
    cp.start()
    cp.wait()


def transformer_decoder_base_forward(encoding: jax.Array) -> jax.Array:
    """Pallas implementation of TransformerDecoderBase.forward (identity pass-through).

    encoding: (B, S, D) float array (D == model `dim`).
    """
    return pl.pallas_call(
        _decoder_base_copy_kernel,
        out_shape=jax.ShapeDtypeStruct(encoding.shape, encoding.dtype),
        in_specs=[pl.BlockSpec(memory_space=pl.ANY)],   # raw HBM ref, no auto-DMA
        out_specs=pl.BlockSpec(memory_space=pl.ANY),    # raw HBM ref, no auto-DMA
        scratch_shapes=[pltpu.SemaphoreType.DMA],
    )(encoding)


class TransformerDecoderBasePallas:
    """Mirror of the PyTorch base class: stores `dim`; forward is the (empty) base pass."""

    def __init__(self, dim: int):
        self.dim = dim  # the base class declares no parameters

    def forward(self, encoding: jax.Array) -> jax.Array:
        assert encoding.shape[-1] == self.dim, "last axis must equal self.dim"
        return transformer_decoder_base_forward(encoding)

    __call__ = forward


if __name__ == "__main__":
    # Small deterministic example: batch=2, seq=8, dim=32.
    key = jax.random.PRNGKey(0)
    B, S, D = 2, 8, 32
    encoding = jax.random.normal(key, (B, S, D), dtype=jnp.float32)

    module = TransformerDecoderBasePallas(dim=D)
    out = jax.block_until_ready(module(encoding))

    # Sanity: abstract base forward carries the encoding through unchanged.
    assert out.shape == (B, S, D)
    assert bool(jnp.allclose(out, encoding))

    print("KERNEL_OK")
</pallas_src>

<mosaic_0001>
module attributes {stable_mosaic.version = 11 : i64} {
  func.func @_decoder_base_copy_kernel(%arg0: memref<2x8x32xf32, #tpu.memory_space<any>>, %arg1: memref<2x8x32xf32, #tpu.memory_space<any>>, %arg2: memref<!tpu.dma_semaphore, #tpu.memory_space<semaphore_mem>>) attributes {dimension_semantics = [], scalar_prefetch = 0 : i64, scratch_operands = 1 : i64, tpu.core_type = #tpu.core_type<tc>} {
    tpu.enqueue_dma source(%arg0 : memref<2x8x32xf32, #tpu.memory_space<any>>) target(%arg1 : memref<2x8x32xf32, #tpu.memory_space<any>>) target_semaphore(%arg2 : memref<!tpu.dma_semaphore, #tpu.memory_space<semaphore_mem>>)
    tpu.wait_dma2 semaphore(%arg2 : memref<!tpu.dma_semaphore, #tpu.memory_space<semaphore_mem>>) src(%arg0 : memref<2x8x32xf32, #tpu.memory_space<any>>) dst(%arg1 : memref<2x8x32xf32, #tpu.memory_space<any>>)
    return
  }
}

</mosaic_0001>

<llo_original>
// kernel: tpu_custom_call.1
$region0: #{tpu_custom_call.1}
  #allocation0 [shape = 'u32[]', space=smem, size = 0x4, offset = 0x4, fixed_abs, tag = 'smem constant byte address 0x4 - core index']
  #allocation1 [shape = 'u32[144,128]{1,0:T(1,128)}', space=vmem, size = 0x12000, scoped, tag = 'internal scratch']
  #allocation2 [shape = 's32[1]{0}', space=sflag, size = 0x4, scoped, tag = 'scratch operand']
  #allocation3 [shape = 's32[]', space=sflag, size = 0x4, offset = 0, fixed_abs, tag = 'sflag constant byte address 0x0 - dummy sync flag']
  #allocation4 [shape = 'u32[0]{0}', space=smem, size = 0, offset = 0, fixed_abs, tag = 'smem constant byte address 0x0 - null']
  %s0 = inlined_call_operand.hbm [shape: f32[2,8,32], index: 0, kind: input, shape index: {}]
  %s1 = inlined_call_operand.hbm [shape: f32[2,8,32], index: 1, kind: output, shape index: {}]
  %s2 = sld [smem:[#allocation0]]
  $region2: #{tpu_custom_call.1} parent=0
    _
  %s4 = ssub.s32 1, %s2
  %s5 = scalar_select 0, %s4, %s2
  %s7 = sshll.u32 1, 14
  %s8 = sxor.u32 4294967295, %s7
  %s11 = sshll.u32 3, 24
  %s12 = sxor.u32 4294967295, %s11
  %s13 = sand.u32 0, %s12
  %s15 = sor.u32 %s13, 0
  %18 = dma.general %s0, 256, %s1, [#allocation2], [#allocation3], [#allocation4], %s15, 0
  %s19 = smul.u32 2, 8
  %s20 = smul.u32 %s19, 1
  %s21 = sshll.u32 %s20, 4
  %22 = dma.done [#allocation2], %s21
  %23 = vsyncmov [#allocation2]
  %s24 = vpop.sfrf %23
  %p25 = scmp.eq.s32.totalorder %s24, 0
  %p26 = pneg %p25
  %28 = shalt.err (%p26)

</llo_original>
